<compile_context>
chip_gen: v7x
topology: tpu7x:2x2x1
jax: 0.10.0
libtpu: 0.0.40
codegen_flags: <defaults>
</compile_context>

<pallas_src>
import jax
import jax.numpy as jnp
from jax.experimental import pallas as pl
from jax.experimental.pallas import tpu as pltpu


def _logreg_kernel(x_ref, w_ref, b_ref, o_ref):
    # x_ref: (TILE_R, 128) f32 in VMEM
    # w_ref: (1, 1) f32 in SMEM   (Linear.weight)
    # b_ref: (1, 1) f32 in SMEM   (Linear.bias)
    x = x_ref[...]                       # lane-dense tile
    w = w_ref[0, 0]                      # scalar from SMEM (sreg broadcast)
    b = b_ref[0, 0]
    z = x * w + b                        # affine (in_features = out_features = 1)
    e = jnp.exp(-z)                      # EUP
    o_ref[...] = pl.reciprocal(1.0 + e, approx=True)   # EUP reciprocal (sigmoid)


def logistic_regression_forward(x, weight, bias, *, tile_r=512):
    """x: (N, 1) f32, weight: (1, 1) f32, bias: (1,) f32 -> (N, 1) f32."""
    n, in_features = x.shape
    assert in_features == 1, "LogisticRegressionModel has in_features == 1"
    dtype = x.dtype
    lanes = 128

    # Lane-dense reshape: N elements -> (rows, 128), padded so that rows is a
    # multiple of the row-tile and the (8, 128) tiling constraint holds.
    rows = pl.cdiv(n, lanes)
    tile_r = min(tile_r, max(8, ((rows + 7) // 8) * 8))
    padded_rows = ((rows + tile_r - 1) // tile_r) * tile_r
    padded_n = padded_rows * lanes

    x_flat = jnp.pad(x.reshape(-1), (0, padded_n - n))
    x2d = x_flat.reshape(padded_rows, lanes)

    w2d = weight.reshape(1, 1).astype(dtype)
    b2d = bias.reshape(1, 1).astype(dtype)

    grid = (padded_rows // tile_r,)

    out2d = pl.pallas_call(
        _logreg_kernel,
        out_shape=jax.ShapeDtypeStruct((padded_rows, lanes), dtype),
        grid=grid,
        in_specs=[
            pl.BlockSpec((tile_r, lanes), lambda i: (i, 0)),          # x tile (VMEM)
            pl.BlockSpec(memory_space=pltpu.MemorySpace.SMEM),        # weight scalar
            pl.BlockSpec(memory_space=pltpu.MemorySpace.SMEM),        # bias scalar
        ],
        out_specs=pl.BlockSpec((tile_r, lanes), lambda i: (i, 0)),
        compiler_params=pltpu.CompilerParams(
            dimension_semantics=("parallel",),
        ),
    )(x2d, w2d, b2d)

    # Undo padding / lane-dense layout.
    return out2d.reshape(-1)[:n].reshape(n, 1)


if __name__ == "__main__":
    key = jax.random.PRNGKey(0)
    kx, kw, kb = jax.random.split(key, 3)

    batch = 8
    # Deterministic synthetic parameters (torch.nn.Linear(1, 1) shapes).
    x = jax.random.normal(kx, (batch, 1), dtype=jnp.float32)
    weight = jax.random.normal(kw, (1, 1), dtype=jnp.float32) * 0.5
    bias = jax.random.normal(kb, (1,), dtype=jnp.float32) * 0.1

    y = logistic_regression_forward(x, weight, bias)
    jax.block_until_ready(y)

    # Pure-JAX reference check (approx EUP reciprocal -> loose-ish tolerance).
    y_ref = jax.nn.sigmoid(x @ weight.T + bias)
    assert y.shape == y_ref.shape
    assert jnp.allclose(y, y_ref, atol=2e-3, rtol=2e-3), "mismatch vs reference"

    print("KERNEL_OK")
</pallas_src>

<mosaic_0001>
module attributes {stable_mosaic.version = 11 : i64} {
  func.func @_logreg_kernel(%arg0: i32, %arg1: memref<8x128xf32, #tpu.memory_space<vmem>>, %arg2: memref<1x1xf32, #tpu.memory_space<smem>>, %arg3: memref<1x1xf32, #tpu.memory_space<smem>>, %arg4: memref<8x128xf32, #tpu.memory_space<vmem>>) attributes {dimension_semantics = [#tpu.dimension_semantics<parallel>], iteration_bounds = array<i64: 1>, scalar_prefetch = 0 : i64, scratch_operands = 0 : i64, tpu.core_type = #tpu.core_type<tc>, window_params = [{transform_indices = @transform_0, window_bounds = array<i64: 8, 128>}, {transform_indices = @transform_1, window_bounds = array<i64: 1, 1>}, {transform_indices = @transform_2, window_bounds = array<i64: 1, 1>}, {transform_indices = @transform_3, window_bounds = array<i64: 8, 128>}]} {
    %c0 = arith.constant 0 : index
    %c0_0 = arith.constant 0 : index
    %0 = vector.load %arg1[%c0, %c0_0] : memref<8x128xf32, #tpu.memory_space<vmem>>, vector<8x128xf32>
    %c0_1 = arith.constant 0 : index
    %c0_2 = arith.constant 0 : index
    %1 = memref.load %arg2[%c0_1, %c0_2] : memref<1x1xf32, #tpu.memory_space<smem>>
    %c0_3 = arith.constant 0 : index
    %c0_4 = arith.constant 0 : index
    %2 = memref.load %arg3[%c0_3, %c0_4] : memref<1x1xf32, #tpu.memory_space<smem>>
    %3 = vector.broadcast %1 : f32 to vector<8x128xf32>
    %4 = arith.mulf %0, %3 : vector<8x128xf32>
    %5 = vector.broadcast %2 : f32 to vector<8x128xf32>
    %6 = arith.addf %4, %5 : vector<8x128xf32>
    %cst = arith.constant 0.000000e+00 : f32
    %7 = vector.broadcast %cst : f32 to vector<8x128xf32>
    %8 = arith.subf %7, %6 : vector<8x128xf32>
    %9 = math.exp %8 : vector<8x128xf32>
    %cst_5 = arith.constant 1.000000e+00 : f32
    %10 = vector.broadcast %cst_5 : f32 to vector<8x128xf32>
    %11 = arith.addf %10, %9 : vector<8x128xf32>
    %12 = tpu.reciprocal %11 {approx = true} : vector<8x128xf32> -> vector<8x128xf32>
    %c0_6 = arith.constant 0 : index
    %c0_7 = arith.constant 0 : index
    %13 = vector.load %arg4[%c0_6, %c0_7] : memref<8x128xf32, #tpu.memory_space<vmem>>, vector<8x128xf32>
    tpu.vector_store %arg4[%c0_6, %c0_7], %12 {strides = array<i32>} : memref<8x128xf32, #tpu.memory_space<vmem>>, vector<8x128xf32>,
    return
  }
  func.func @transform_0(%arg0: i32) -> (i32, i32) {
    %c0_i32 = arith.constant 0 : i32
    %c0_i32_0 = arith.constant 0 : i32
    return %arg0, %c0_i32 : i32, i32
  }
  func.func @transform_1(%arg0: i32) -> (i32, i32) {
    %c0_i32 = arith.constant 0 : i32
    %c0_i32_0 = arith.constant 0 : i32
    %c0_i32_1 = arith.constant 0 : i32
    return %c0_i32, %c0_i32_0 : i32, i32
  }
  func.func @transform_2(%arg0: i32) -> (i32, i32) {
    %c0_i32 = arith.constant 0 : i32
    %c0_i32_0 = arith.constant 0 : i32
    %c0_i32_1 = arith.constant 0 : i32
    return %c0_i32, %c0_i32_0 : i32, i32
  }
  func.func @transform_3(%arg0: i32) -> (i32, i32) {
    %c0_i32 = arith.constant 0 : i32
    %c0_i32_0 = arith.constant 0 : i32
    return %arg0, %c0_i32 : i32, i32
  }
}

</mosaic_0001>

<llo_original>
// kernel: tpu_custom_call.1
$region0: #{tpu_custom_call.1}
  #allocation0 [shape = 'u32[]', space=smem, size = 0x4, offset = 0x4, fixed_abs, tag = 'smem constant byte address 0x4 - core index']
  #allocation1 [shape = 'u32[144,128]{1,0:T(1,128)}', space=vmem, size = 0x12000, scoped, tag = 'internal scratch']
  #allocation2 [shape = 'f32[1,1]{1,0:T(1,128)S(6)}', space=smem, size = 0x200, scoped, tag = 'scoped memory for tpu_custom_call.1']
  #allocation3 [shape = 'f32[1,1]{1,0:T(1,128)S(6)}', space=smem, size = 0x200, scoped, tag = 'scoped memory for tpu_custom_call.1']
  %s0 = inlined_call_operand.hbm [shape: f32[8,128], index: 0, kind: input, shape index: {}]
  %s1 = inlined_call_operand.<no memory space> [shape: f32[1,1], index: 1, kind: input, shape index: {}]
  %s2 = inlined_call_operand.<no memory space> [shape: f32[1,1], index: 2, kind: input, shape index: {}]
  %s3 = inlined_call_operand.hbm [shape: f32[8,128], index: 3, kind: output, shape index: {}]
  %s4 = sld [smem:[#allocation0]]
  $region26: #{tpu_custom_call.1} parent=0
    _
  %s6 = ssub.s32 1, %s4
  %s7 = scalar_select 0, %s6, %s4
  %8 = sst [smem:[#allocation2]] %s1
  %9 = sst [smem:[#allocation3]] %s2
  $region1: #{tpu_custom_call.1} parent=0
    #allocation4 [shape = 'u8[4096]{0}', space=vmem, size = 0x1000, scoped, tag = 'input window, operand 0, single buffered']
    #allocation5 [shape = 's32[1]{0}', space=sflag, size = 0x4, scoped, tag = 'scoped memory for tpu_custom_call.1']
    #allocation6 [shape = 's32[1]{0}', space=sflag, size = 0x4, scoped, tag = 'scoped memory for tpu_custom_call.1']
    #allocation7 [shape = 'u8[4096]{0}', space=vmem, size = 0x1000, scoped, tag = 'output window, operand 0, single buffered']
    %10 = vsyncpa [#allocation5], 0
    %11 = vsyncpa [#allocation6], 0
    // Predicated region
    $region2: #{tpu_custom_call.1} parent=1 // pred_check
      _
    $region3: #{tpu_custom_call.1} parent=1 // pred_check_branch
      %13 = sbr.rel (0) target = $region5
    $region4: #{tpu_custom_call.1} parent=1 // pred_region
      %s15 = ssub.s32 128, 128
      %16 = vsyncadd [#allocation5], %s15
      %s18 = sshll.u32 [#allocation4], 4
      %s19 = int_to_ptr.vmem [resolvable:$true] %s18
      %21 = dma.hbm_to_vmem [thread:$0]  %s0, 128, %s19, [#allocation5]
    $region5: #{tpu_custom_call.1} parent=1 // pred_fallthru
      _
    // Predicated region
    $region6: #{tpu_custom_call.1} parent=1 // pred_check
      _
    $region7: #{tpu_custom_call.1} parent=1 // pred_check_branch
      %23 = sbr.rel (0) target = $region9
    $region8: #{tpu_custom_call.1} parent=1 // pred_region
      _
    $region9: #{tpu_custom_call.1} parent=1 // pred_fallthru
      _
    // Predicated region
    $region10: #{tpu_custom_call.1} parent=1 // pred_check
      _
    $region11: #{tpu_custom_call.1} parent=1 // pred_check_branch
      %25 = sbr.rel (0) target = $region13
    $region12: #{tpu_custom_call.1} parent=1 // pred_region
      _
    $region13: #{tpu_custom_call.1} parent=1 // pred_fallthru
      _
    // Predicated region
    $region14: #{tpu_custom_call.1} parent=1 // pred_check
      _
    $region15: #{tpu_custom_call.1} parent=1 // pred_check_branch
      %27 = sbr.rel (0) target = $region17
    $region16: #{tpu_custom_call.1} parent=1 // pred_region
      %28 = dma.done [#allocation5], 128
    $region17: #{tpu_custom_call.1} parent=1 // pred_fallthru
      _
    %v29 = vld [vmem:[#allocation4] sm:$0xff]
    %s30 = sld [smem:[#allocation2]]
    %s31 = sld [smem:[#allocation3]]
    %v32 = vstv %s30
    %v33 = vmul.f32 %v29, %v32
    %v34 = vstv %s31
    %v35 = vadd.f32 %v33, %v34
    %v36 = vsub.f32 0.0, %v35
    %v37 = vmul.f32 %v36, 1.442695
    %v38 = vpow.pop %v37
    %v39 = vadd.f32 %v38, 1.0
    %v40 = vrcp.pop %v39
    %41 = vst [vmem:[#allocation7] sm:$0xff] %v40
    // Predicated region
    $region18: #{tpu_custom_call.1} parent=1 // pred_check
      _
    $region19: #{tpu_custom_call.1} parent=1 // pred_check_branch
      %43 = sbr.rel (0) target = $region21
    $region20: #{tpu_custom_call.1} parent=1 // pred_region
      %s45 = ssub.s32 128, 128
      %46 = vsyncadd [#allocation6], %s45
      %s48 = sshll.u32 [#allocation7], 4
      %s49 = int_to_ptr.vmem [resolvable:$true] %s48
      %51 = dma.vmem_to_hbm [thread:$0]  %s49, 128, %s3, [#allocation6]
    $region21: #{tpu_custom_call.1} parent=1 // pred_fallthru
      _
    // Predicated region
    $region22: #{tpu_custom_call.1} parent=1 // pred_check
      _
    $region23: #{tpu_custom_call.1} parent=1 // pred_check_branch
      %53 = sbr.rel (0) target = $region25
    $region24: #{tpu_custom_call.1} parent=1 // pred_region
      %54 = dma.done [#allocation6], 128
    $region25: #{tpu_custom_call.1} parent=1 // pred_fallthru
      _
    %55 = vsyncpa [#allocation5], 1
    %56 = vsyncpa [#allocation6], 1

</llo_original>
